<compile_context>
chip_gen: v7x
topology: tpu7x:2x2x1
jax: 0.10.0
libtpu: 0.0.40
codegen_flags: <defaults>
</compile_context>

<pallas_src>
import functools

import jax
import jax.numpy as jnp
from jax.experimental import pallas as pl


def _round_up(n, m):
    return (n + m - 1) // m * m


def _fused_torsion_kernel(x_ref, *refs):
    """All TorsionMLP layers fused: per layer, ELU -> BN(batch stats) -> 1x1 conv.

    x_ref : (T, C0p) f32, tokens x (padded) input channels, T = N*L
    refs  : for each layer (gamma (1,Cin_p) f32, beta (1,Cin_p) f32,
            w (Cin_p,Cout_p) bf16, bias (1,Cout_p) f32), followed by o_ref (T, CLp) f32.
    """
    o_ref = refs[-1]
    prm = refs[:-1]
    n_layers = len(prm) // 4

    h = x_ref[...]                       # f32
    for l in range(n_layers):            # static unroll; shapes differ per layer
        gamma = prm[4 * l][...]
        beta = prm[4 * l + 1][...]
        w = prm[4 * l + 2][...]          # bf16, already padded + transposed to (Cin, Cout)
        bias = prm[4 * l + 3][...]

        # ELU (alpha=1), matching func.elu_.  exp is guarded with min(x, 0) so it is
        # never evaluated on large positives (exp(x)-1 == expm1 up to f32 rounding;
        # the difference is negligible for a forward pass).
        a = jnp.where(h > 0.0, h, jnp.exp(jnp.minimum(h, 0.0)) - 1.0)

        # BatchNorm1d (training mode): per-channel stats over all T tokens, biased var.
        mean = jnp.mean(a, axis=0, keepdims=True)              # (1, Cin_p)
        c = a - mean
        var = jnp.mean(c * c, axis=0, keepdims=True)            # biased variance
        scale = gamma * jax.lax.rsqrt(var + 1e-5)                # gamma * inv_std
        xn = c * scale + beta                                     # single fused affine pass

        # 1x1 Conv1d == channel matmul + bias: bf16 operands, f32 accumulation (MXU).
        h = jnp.dot(xn.astype(jnp.bfloat16), w,
                    preferred_element_type=jnp.float32) + bias

    o_ref[...] = h.astype(o_ref.dtype)


def init_torsion_mlp_params(key, in_size, hidden_sizes, phi_bins, psi_bins):
    """Deterministic synthetic parameters (unpadded f32; shapes match the PyTorch module)."""
    sizes = [in_size] + list(hidden_sizes) + [phi_bins * psi_bins]
    params = []
    for idx in range(len(sizes) - 1):
        cin, cout = sizes[idx], sizes[idx + 1]
        key, kw, kb = jax.random.split(key, 3)
        bound = 1.0 / jnp.sqrt(jnp.float32(cin))
        # Conv1d(cin, cout, 1): weight (cout, cin, 1) -> stored as (cin, cout) for matmul.
        w = jax.random.uniform(kw, (cin, cout), jnp.float32, -bound, bound)
        b = jax.random.uniform(kb, (1, cout), jnp.float32, -bound, bound)
        gamma = jnp.ones((1, cin), jnp.float32)   # BN scale init
        beta = jnp.zeros((1, cin), jnp.float32)   # BN shift init
        params.append((gamma, beta, w, b))
    return params


def prepare_params(params):
    """Pad channel dims to multiples of 128 lanes and pre-cast conv weights to bf16."""
    prepped = []
    for gamma, beta, w, b in params:
        cin, cout = w.shape
        cin_p, cout_p = _round_up(cin, 128), _round_up(cout, 128)
        prepped.append((
            jnp.pad(gamma, ((0, 0), (0, cin_p - cin)), constant_values=1.0),
            jnp.pad(beta, ((0, 0), (0, cin_p - cin))),                      # beta_pad = 0
            jnp.pad(w, ((0, cin_p - cin), (0, cout_p - cout))).astype(jnp.bfloat16),
            jnp.pad(b, ((0, 0), (0, cout_p - cout))),
        ))
    return prepped


@functools.partial(jax.jit, static_argnames=("out_channels",))
def torsion_mlp_forward(x_ncl, prepped_params, *, out_channels):
    """x_ncl: (N, C, L) f32 (PyTorch NCL layout).  Returns (N, out_channels, L) f32."""
    N, C, L = x_ncl.shape
    T = N * L
    cin0_p = prepped_params[0][0].shape[1]
    cout_last_p = prepped_params[-1][3].shape[1]

    # NCL -> lane-dense token-major (T, C) slab; zero-pad input channels to 128 lanes.
    x_tc = jnp.transpose(x_ncl, (0, 2, 1)).reshape(T, C)
    x_tc = jnp.pad(x_tc, ((0, 0), (0, cin0_p - C)))

    flat = [arr for layer in prepped_params for arr in layer]
    in_specs = [pl.BlockSpec(arr.shape, lambda: (0, 0)) for arr in (x_tc, *flat)]

    out_p = pl.pallas_call(
        _fused_torsion_kernel,
        out_shape=jax.ShapeDtypeStruct((T, cout_last_p), jnp.float32),
        in_specs=in_specs,
        out_specs=pl.BlockSpec((T, cout_last_p), lambda: (0, 0)),
    )(x_tc, *flat)

    # Drop channel padding and restore PyTorch NCL layout.
    out = out_p[:, :out_channels]
    return jnp.transpose(out.reshape(N, L, out_channels), (0, 2, 1))


def torsion_mlp_reference(x_ncl, params):
    """Pure-JAX f32 reference with identical semantics (for validation)."""
    N, C, L = x_ncl.shape
    out = jnp.transpose(x_ncl, (0, 2, 1)).reshape(N * L, C)
    for gamma, beta, w, b in params:
        a = jnp.where(out > 0.0, out, jnp.exp(jnp.minimum(out, 0.0)) - 1.0)
        mean = jnp.mean(a, axis=0, keepdims=True)
        var = jnp.mean((a - mean) ** 2, axis=0, keepdims=True)
        xn = (a - mean) * jax.lax.rsqrt(var + 1e-5) * gamma + beta
        out = jnp.dot(xn, w, precision=jax.lax.Precision.HIGHEST) + b
    cout = out.shape[-1]
    return jnp.transpose(out.reshape(N, L, cout), (0, 2, 1))


if __name__ == "__main__":
    # Small shapes consistent with the module: in_size=32, hidden=[64, 128, 256],
    # phi_bins=psi_bins=8 (output channels = 64), batch N=2, sequence length L=16.
    in_size = 32
    hidden_sizes = [64, 128, 256]
    phi_bins = 8
    psi_bins = 8
    N, L = 2, 16
    out_channels = phi_bins * psi_bins

    key = jax.random.PRNGKey(0)
    key, kx = jax.random.split(key)
    x = jax.random.normal(kx, (N, in_size, L), jnp.float32)   # NCL, like PyTorch Conv1d

    params = init_torsion_mlp_params(key, in_size, hidden_sizes, phi_bins, psi_bins)
    prepped = prepare_params(params)

    out = torsion_mlp_forward(x, prepped, out_channels=out_channels)
    jax.block_until_ready(out)
    assert out.shape == (N, out_channels, L), out.shape

    # Validate against the f32 reference (tolerance covers the bf16 MXU operands).
    ref = jax.jit(torsion_mlp_reference)(x, params)
    err = float(jnp.max(jnp.abs(out - ref)) / (jnp.max(jnp.abs(ref)) + 1e-6))
    assert err < 5e-2, f"normalized max error too large: {err}"

    print("KERNEL_OK")
</pallas_src>

<mosaic_0001>
module attributes {stable_mosaic.version = 11 : i64} {
  func.func @_fused_torsion_kernel(%arg0: memref<32x128xf32, #tpu.memory_space<vmem>>, %arg1: memref<1x128xf32, #tpu.memory_space<vmem>>, %arg2: memref<1x128xf32, #tpu.memory_space<vmem>>, %arg3: memref<128x128xbf16, #tpu.memory_space<vmem>>, %arg4: memref<1x128xf32, #tpu.memory_space<vmem>>, %arg5: memref<1x128xf32, #tpu.memory_space<vmem>>, %arg6: memref<1x128xf32, #tpu.memory_space<vmem>>, %arg7: memref<128x128xbf16, #tpu.memory_space<vmem>>, %arg8: memref<1x128xf32, #tpu.memory_space<vmem>>, %arg9: memref<1x128xf32, #tpu.memory_space<vmem>>, %arg10: memref<1x128xf32, #tpu.memory_space<vmem>>, %arg11: memref<128x256xbf16, #tpu.memory_space<vmem>>, %arg12: memref<1x256xf32, #tpu.memory_space<vmem>>, %arg13: memref<1x256xf32, #tpu.memory_space<vmem>>, %arg14: memref<1x256xf32, #tpu.memory_space<vmem>>, %arg15: memref<256x128xbf16, #tpu.memory_space<vmem>>, %arg16: memref<1x128xf32, #tpu.memory_space<vmem>>, %arg17: memref<32x128xf32, #tpu.memory_space<vmem>>) attributes {dimension_semantics = [], scalar_prefetch = 0 : i64, scratch_operands = 0 : i64, tpu.core_type = #tpu.core_type<tc>} {
    %c0 = arith.constant 0 : index
    %c0_0 = arith.constant 0 : index
    %0 = vector.load %arg0[%c0, %c0_0] : memref<32x128xf32, #tpu.memory_space<vmem>>, vector<32x128xf32>
    %c0_1 = arith.constant 0 : index
    %c0_2 = arith.constant 0 : index
    %1 = vector.load %arg1[%c0_1, %c0_2] : memref<1x128xf32, #tpu.memory_space<vmem>>, vector<1x128xf32>
    %c0_3 = arith.constant 0 : index
    %c0_4 = arith.constant 0 : index
    %2 = vector.load %arg2[%c0_3, %c0_4] : memref<1x128xf32, #tpu.memory_space<vmem>>, vector<1x128xf32>
    %c0_5 = arith.constant 0 : index
    %c0_6 = arith.constant 0 : index
    %3 = vector.load %arg3[%c0_5, %c0_6] : memref<128x128xbf16, #tpu.memory_space<vmem>>, vector<128x128xbf16>
    %c0_7 = arith.constant 0 : index
    %c0_8 = arith.constant 0 : index
    %4 = vector.load %arg4[%c0_7, %c0_8] : memref<1x128xf32, #tpu.memory_space<vmem>>, vector<1x128xf32>
    %cst = arith.constant 0.000000e+00 : f32
    %5 = vector.broadcast %cst : f32 to vector<32x128xf32>
    %6 = arith.cmpf ogt, %0, %5 : vector<32x128xf32>
    %cst_9 = arith.constant 0.000000e+00 : f32
    %7 = vector.broadcast %cst_9 : f32 to vector<32x128xf32>
    %8 = arith.minimumf %0, %7 : vector<32x128xf32>
    %9 = math.exp %8 : vector<32x128xf32>
    %cst_10 = arith.constant 1.000000e+00 : f32
    %10 = vector.broadcast %cst_10 : f32 to vector<32x128xf32>
    %11 = arith.subf %9, %10 : vector<32x128xf32>
    %12 = arith.select %6, %0, %11 : vector<32x128xi1>, vector<32x128xf32>
    %cst_11 = arith.constant dense<0.000000e+00> : vector<128xf32>
    %13 = vector.multi_reduction <add>, %12, %cst_11 [0] : vector<32x128xf32> to vector<128xf32>
    %14 = vector.shape_cast %13 : vector<128xf32> to vector<1x128xf32>
    %cst_12 = arith.constant 3.200000e+01 : f32
    %15 = vector.broadcast %cst_12 : f32 to vector<1x128xf32>
    %16 = arith.divf %14, %15 : vector<1x128xf32>
    %17 = vector.broadcast %16 : vector<1x128xf32> to vector<32x128xf32>
    %18 = arith.subf %12, %17 : vector<32x128xf32>
    %19 = arith.mulf %18, %18 : vector<32x128xf32>
    %cst_13 = arith.constant dense<0.000000e+00> : vector<128xf32>
    %20 = vector.multi_reduction <add>, %19, %cst_13 [0] : vector<32x128xf32> to vector<128xf32>
    %21 = vector.shape_cast %20 : vector<128xf32> to vector<1x128xf32>
    %cst_14 = arith.constant 3.200000e+01 : f32
    %22 = vector.broadcast %cst_14 : f32 to vector<1x128xf32>
    %23 = arith.divf %21, %22 : vector<1x128xf32>
    %cst_15 = arith.constant 9.99999974E-6 : f32
    %24 = vector.broadcast %cst_15 : f32 to vector<1x128xf32>
    %25 = arith.addf %23, %24 : vector<1x128xf32>
    %26 = math.rsqrt %25 : vector<1x128xf32>
    %27 = arith.mulf %1, %26 : vector<1x128xf32>
    %28 = vector.broadcast %27 : vector<1x128xf32> to vector<32x128xf32>
    %29 = arith.mulf %18, %28 : vector<32x128xf32>
    %30 = vector.broadcast %2 : vector<1x128xf32> to vector<32x128xf32>
    %31 = arith.addf %29, %30 : vector<32x128xf32>
    %32 = arith.truncf %31 : vector<32x128xf32> to vector<32x128xbf16>
    %cst_16 = arith.constant dense<0.000000e+00> : vector<32x128xf32>
    %33 = tpu.matmul %32, %3, %cst_16 {dimension_numbers = #tpu.dot_dimension_numbers<[1], [0], [0], [1], [0, 0, 1, 1], [], []>} : vector<32x128xbf16>, vector<128x128xbf16>, vector<32x128xf32> -> vector<32x128xf32>
    %34 = vector.broadcast %4 : vector<1x128xf32> to vector<32x128xf32>
    %35 = arith.addf %33, %34 : vector<32x128xf32>
    %c0_17 = arith.constant 0 : index
    %c0_18 = arith.constant 0 : index
    %36 = vector.load %arg5[%c0_17, %c0_18] : memref<1x128xf32, #tpu.memory_space<vmem>>, vector<1x128xf32>
    %c0_19 = arith.constant 0 : index
    %c0_20 = arith.constant 0 : index
    %37 = vector.load %arg6[%c0_19, %c0_20] : memref<1x128xf32, #tpu.memory_space<vmem>>, vector<1x128xf32>
    %c0_21 = arith.constant 0 : index
    %c0_22 = arith.constant 0 : index
    %38 = vector.load %arg7[%c0_21, %c0_22] : memref<128x128xbf16, #tpu.memory_space<vmem>>, vector<128x128xbf16>
    %c0_23 = arith.constant 0 : index
    %c0_24 = arith.constant 0 : index
    %39 = vector.load %arg8[%c0_23, %c0_24] : memref<1x128xf32, #tpu.memory_space<vmem>>, vector<1x128xf32>
    %cst_25 = arith.constant 0.000000e+00 : f32
    %40 = vector.broadcast %cst_25 : f32 to vector<32x128xf32>
    %41 = arith.cmpf ogt, %35, %40 : vector<32x128xf32>
    %cst_26 = arith.constant 0.000000e+00 : f32
    %42 = vector.broadcast %cst_26 : f32 to vector<32x128xf32>
    %43 = arith.minimumf %35, %42 : vector<32x128xf32>
    %44 = math.exp %43 : vector<32x128xf32>
    %cst_27 = arith.constant 1.000000e+00 : f32
    %45 = vector.broadcast %cst_27 : f32 to vector<32x128xf32>
    %46 = arith.subf %44, %45 : vector<32x128xf32>
    %47 = arith.select %41, %35, %46 : vector<32x128xi1>, vector<32x128xf32>
    %cst_28 = arith.constant dense<0.000000e+00> : vector<128xf32>
    %48 = vector.multi_reduction <add>, %47, %cst_28 [0] : vector<32x128xf32> to vector<128xf32>
    %49 = vector.shape_cast %48 : vector<128xf32> to vector<1x128xf32>
    %cst_29 = arith.constant 3.200000e+01 : f32
    %50 = vector.broadcast %cst_29 : f32 to vector<1x128xf32>
    %51 = arith.divf %49, %50 : vector<1x128xf32>
    %52 = vector.broadcast %51 : vector<1x128xf32> to vector<32x128xf32>
    %53 = arith.subf %47, %52 : vector<32x128xf32>
    %54 = arith.mulf %53, %53 : vector<32x128xf32>
    %cst_30 = arith.constant dense<0.000000e+00> : vector<128xf32>
    %55 = vector.multi_reduction <add>, %54, %cst_30 [0] : vector<32x128xf32> to vector<128xf32>
    %56 = vector.shape_cast %55 : vector<128xf32> to vector<1x128xf32>
    %cst_31 = arith.constant 3.200000e+01 : f32
    %57 = vector.broadcast %cst_31 : f32 to vector<1x128xf32>
    %58 = arith.divf %56, %57 : vector<1x128xf32>
    %cst_32 = arith.constant 9.99999974E-6 : f32
    %59 = vector.broadcast %cst_32 : f32 to vector<1x128xf32>
    %60 = arith.addf %58, %59 : vector<1x128xf32>
    %61 = math.rsqrt %60 : vector<1x128xf32>
    %62 = arith.mulf %36, %61 : vector<1x128xf32>
    %63 = vector.broadcast %62 : vector<1x128xf32> to vector<32x128xf32>
    %64 = arith.mulf %53, %63 : vector<32x128xf32>
    %65 = vector.broadcast %37 : vector<1x128xf32> to vector<32x128xf32>
    %66 = arith.addf %64, %65 : vector<32x128xf32>
    %67 = arith.truncf %66 : vector<32x128xf32> to vector<32x128xbf16>
    %cst_33 = arith.constant dense<0.000000e+00> : vector<32x128xf32>
    %68 = tpu.matmul %67, %38, %cst_33 {dimension_numbers = #tpu.dot_dimension_numbers<[1], [0], [0], [1], [0, 0, 1, 1], [], []>} : vector<32x128xbf16>, vector<128x128xbf16>, vector<32x128xf32> -> vector<32x128xf32>
    %69 = vector.broadcast %39 : vector<1x128xf32> to vector<32x128xf32>
    %70 = arith.addf %68, %69 : vector<32x128xf32>
    %c0_34 = arith.constant 0 : index
    %c0_35 = arith.constant 0 : index
    %71 = vector.load %arg9[%c0_34, %c0_35] : memref<1x128xf32, #tpu.memory_space<vmem>>, vector<1x128xf32>
    %c0_36 = arith.constant 0 : index
    %c0_37 = arith.constant 0 : index
    %72 = vector.load %arg10[%c0_36, %c0_37] : memref<1x128xf32, #tpu.memory_space<vmem>>, vector<1x128xf32>
    %c0_38 = arith.constant 0 : index
    %c0_39 = arith.constant 0 : index
    %73 = vector.load %arg11[%c0_38, %c0_39] : memref<128x256xbf16, #tpu.memory_space<vmem>>, vector<128x256xbf16>
    %c0_40 = arith.constant 0 : index
    %c0_41 = arith.constant 0 : index
    %74 = vector.load %arg12[%c0_40, %c0_41] : memref<1x256xf32, #tpu.memory_space<vmem>>, vector<1x256xf32>
    %cst_42 = arith.constant 0.000000e+00 : f32
    %75 = vector.broadcast %cst_42 : f32 to vector<32x128xf32>
    %76 = arith.cmpf ogt, %70, %75 : vector<32x128xf32>
    %cst_43 = arith.constant 0.000000e+00 : f32
    %77 = vector.broadcast %cst_43 : f32 to vector<32x128xf32>
    %78 = arith.minimumf %70, %77 : vector<32x128xf32>
    %79 = math.exp %78 : vector<32x128xf32>
    %cst_44 = arith.constant 1.000000e+00 : f32
    %80 = vector.broadcast %cst_44 : f32 to vector<32x128xf32>
    %81 = arith.subf %79, %80 : vector<32x128xf32>
    %82 = arith.select %76, %70, %81 : vector<32x128xi1>, vector<32x128xf32>
    %cst_45 = arith.constant dense<0.000000e+00> : vector<128xf32>
    %83 = vector.multi_reduction <add>, %82, %cst_45 [0] : vector<32x128xf32> to vector<128xf32>
    %84 = vector.shape_cast %83 : vector<128xf32> to vector<1x128xf32>
    %cst_46 = arith.constant 3.200000e+01 : f32
    %85 = vector.broadcast %cst_46 : f32 to vector<1x128xf32>
    %86 = arith.divf %84, %85 : vector<1x128xf32>
    %87 = vector.broadcast %86 : vector<1x128xf32> to vector<32x128xf32>
    %88 = arith.subf %82, %87 : vector<32x128xf32>
    %89 = arith.mulf %88, %88 : vector<32x128xf32>
    %cst_47 = arith.constant dense<0.000000e+00> : vector<128xf32>
    %90 = vector.multi_reduction <add>, %89, %cst_47 [0] : vector<32x128xf32> to vector<128xf32>
    %91 = vector.shape_cast %90 : vector<128xf32> to vector<1x128xf32>
    %cst_48 = arith.constant 3.200000e+01 : f32
    %92 = vector.broadcast %cst_48 : f32 to vector<1x128xf32>
    %93 = arith.divf %91, %92 : vector<1x128xf32>
    %cst_49 = arith.constant 9.99999974E-6 : f32
    %94 = vector.broadcast %cst_49 : f32 to vector<1x128xf32>
    %95 = arith.addf %93, %94 : vector<1x128xf32>
    %96 = math.rsqrt %95 : vector<1x128xf32>
    %97 = arith.mulf %71, %96 : vector<1x128xf32>
    %98 = vector.broadcast %97 : vector<1x128xf32> to vector<32x128xf32>
    %99 = arith.mulf %88, %98 : vector<32x128xf32>
    %100 = vector.broadcast %72 : vector<1x128xf32> to vector<32x128xf32>
    %101 = arith.addf %99, %100 : vector<32x128xf32>
    %102 = arith.truncf %101 : vector<32x128xf32> to vector<32x128xbf16>
    %cst_50 = arith.constant dense<0.000000e+00> : vector<32x256xf32>
    %103 = tpu.matmul %102, %73, %cst_50 {dimension_numbers = #tpu.dot_dimension_numbers<[1], [0], [0], [1], [0, 0, 1, 1], [], []>} : vector<32x128xbf16>, vector<128x256xbf16>, vector<32x256xf32> -> vector<32x256xf32>
    %104 = vector.broadcast %74 : vector<1x256xf32> to vector<32x256xf32>
    %105 = arith.addf %103, %104 : vector<32x256xf32>
    %c0_51 = arith.constant 0 : index
    %c0_52 = arith.constant 0 : index
    %106 = vector.load %arg13[%c0_51, %c0_52] : memref<1x256xf32, #tpu.memory_space<vmem>>, vector<1x256xf32>
    %c0_53 = arith.constant 0 : index
    %c0_54 = arith.constant 0 : index
    %107 = vector.load %arg14[%c0_53, %c0_54] : memref<1x256xf32, #tpu.memory_space<vmem>>, vector<1x256xf32>
    %c0_55 = arith.constant 0 : index
    %c0_56 = arith.constant 0 : index
    %108 = vector.load %arg15[%c0_55, %c0_56] : memref<256x128xbf16, #tpu.memory_space<vmem>>, vector<256x128xbf16>
    %c0_57 = arith.constant 0 : index
    %c0_58 = arith.constant 0 : index
    %109 = vector.load %arg16[%c0_57, %c0_58] : memref<1x128xf32, #tpu.memory_space<vmem>>, vector<1x128xf32>
    %cst_59 = arith.constant 0.000000e+00 : f32
    %110 = vector.broadcast %cst_59 : f32 to vector<32x256xf32>
    %111 = arith.cmpf ogt, %105, %110 : vector<32x256xf32>
    %cst_60 = arith.constant 0.000000e+00 : f32
    %112 = vector.broadcast %cst_60 : f32 to vector<32x256xf32>
    %113 = arith.minimumf %105, %112 : vector<32x256xf32>
    %114 = math.exp %113 : vector<32x256xf32>
    %cst_61 = arith.constant 1.000000e+00 : f32
    %115 = vector.broadcast %cst_61 : f32 to vector<32x256xf32>
    %116 = arith.subf %114, %115 : vector<32x256xf32>
    %117 = arith.select %111, %105, %116 : vector<32x256xi1>, vector<32x256xf32>
    %cst_62 = arith.constant dense<0.000000e+00> : vector<256xf32>
    %118 = vector.multi_reduction <add>, %117, %cst_62 [0] : vector<32x256xf32> to vector<256xf32>
    %119 = vector.shape_cast %118 : vector<256xf32> to vector<1x256xf32>
    %cst_63 = arith.constant 3.200000e+01 : f32
    %120 = vector.broadcast %cst_63 : f32 to vector<1x256xf32>
    %121 = arith.divf %119, %120 : vector<1x256xf32>
    %122 = vector.broadcast %121 : vector<1x256xf32> to vector<32x256xf32>
    %123 = arith.subf %117, %122 : vector<32x256xf32>
    %124 = arith.mulf %123, %123 : vector<32x256xf32>
    %cst_64 = arith.constant dense<0.000000e+00> : vector<256xf32>
    %125 = vector.multi_reduction <add>, %124, %cst_64 [0] : vector<32x256xf32> to vector<256xf32>
    %126 = vector.shape_cast %125 : vector<256xf32> to vector<1x256xf32>
    %cst_65 = arith.constant 3.200000e+01 : f32
    %127 = vector.broadcast %cst_65 : f32 to vector<1x256xf32>
    %128 = arith.divf %126, %127 : vector<1x256xf32>
    %cst_66 = arith.constant 9.99999974E-6 : f32
    %129 = vector.broadcast %cst_66 : f32 to vector<1x256xf32>
    %130 = arith.addf %128, %129 : vector<1x256xf32>
    %131 = math.rsqrt %130 : vector<1x256xf32>
    %132 = arith.mulf %106, %131 : vector<1x256xf32>
    %133 = vector.broadcast %132 : vector<1x256xf32> to vector<32x256xf32>
    %134 = arith.mulf %123, %133 : vector<32x256xf32>
    %135 = vector.broadcast %107 : vector<1x256xf32> to vector<32x256xf32>
    %136 = arith.addf %134, %135 : vector<32x256xf32>
    %137 = arith.truncf %136 : vector<32x256xf32> to vector<32x256xbf16>
    %cst_67 = arith.constant dense<0.000000e+00> : vector<32x128xf32>
    %138 = tpu.matmul %137, %108, %cst_67 {dimension_numbers = #tpu.dot_dimension_numbers<[1], [0], [0], [1], [0, 0, 1, 1], [], []>} : vector<32x256xbf16>, vector<256x128xbf16>, vector<32x128xf32> -> vector<32x128xf32>
    %139 = vector.broadcast %109 : vector<1x128xf32> to vector<32x128xf32>
    %140 = arith.addf %138, %139 : vector<32x128xf32>
    %c0_68 = arith.constant 0 : index
    %c0_69 = arith.constant 0 : index
    %141 = vector.load %arg17[%c0_68, %c0_69] : memref<32x128xf32, #tpu.memory_space<vmem>>, vector<32x128xf32>
    tpu.vector_store %arg17[%c0_68, %c0_69], %140 {strides = array<i32>} : memref<32x128xf32, #tpu.memory_space<vmem>>, vector<32x128xf32>,
    return
  }
}

</mosaic_0001>

<llo_original>
// kernel: torsion_mlp_forward.1
$region0: #{torsion_mlp_forward.1}
  #allocation0 [shape = 'u32[]', space=smem, size = 0x4, offset = 0x4, fixed_abs, tag = 'smem constant byte address 0x4 - core index']
  #allocation1 [shape = 'u32[144,128]{1,0:T(1,128)}', space=vmem, size = 0x12000, scoped, tag = 'internal scratch']
  %s0 = inlined_call_operand.vmem [shape: f32[32,128], index: 0, kind: input, shape index: {}]
  %s1 = inlined_call_operand.vmem [shape: f32[1,128], index: 1, kind: input, shape index: {}]
  %s2 = inlined_call_operand.vmem [shape: f32[1,128], index: 2, kind: input, shape index: {}]
  %s3 = inlined_call_operand.vmem [shape: bf16[128,128], index: 3, kind: input, shape index: {}]
  %s4 = inlined_call_operand.vmem [shape: f32[1,128], index: 4, kind: input, shape index: {}]
  %s5 = inlined_call_operand.vmem [shape: f32[1,128], index: 5, kind: input, shape index: {}]
  %s6 = inlined_call_operand.vmem [shape: f32[1,128], index: 6, kind: input, shape index: {}]
  %s7 = inlined_call_operand.hbm [shape: bf16[128,128], index: 7, kind: input, shape index: {}]
  %s8 = inlined_call_operand.vmem [shape: f32[1,128], index: 8, kind: input, shape index: {}]
  %s9 = inlined_call_operand.vmem [shape: f32[1,128], index: 9, kind: input, shape index: {}]
  %s10 = inlined_call_operand.vmem [shape: f32[1,128], index: 10, kind: input, shape index: {}]
  %s11 = inlined_call_operand.hbm [shape: bf16[128,256], index: 11, kind: input, shape index: {}]
  %s12 = inlined_call_operand.vmem [shape: f32[1,256], index: 12, kind: input, shape index: {}]
  %s13 = inlined_call_operand.vmem [shape: f32[1,256], index: 13, kind: input, shape index: {}]
  %s14 = inlined_call_operand.vmem [shape: f32[1,256], index: 14, kind: input, shape index: {}]
  %s15 = inlined_call_operand.hbm [shape: bf16[256,128], index: 15, kind: input, shape index: {}]
  %s16 = inlined_call_operand.vmem [shape: f32[1,128], index: 16, kind: input, shape index: {}]
  %s17 = inlined_call_operand.hbm [shape: f32[32,128], index: 17, kind: output, shape index: {}]
  %s18 = sld [smem:[#allocation0]]
  $region90: #{torsion_mlp_forward.1} parent=0
    _
  %s20 = ssub.s32 1, %s18
  %s21 = scalar_select 0, %s20, %s18
  $region1: #{torsion_mlp_forward.1} parent=0
    #allocation2 [shape = 'u8[32768]{0}', space=vmem, size = 0x8000, scoped, tag = 'input window, operand 7, single buffered']
    #allocation3 [shape = 's32[1]{0}', space=sflag, size = 0x4, scoped, tag = 'scoped memory for torsion_mlp_forward.1']
    #allocation4 [shape = 's32[1]{0}', space=sflag, size = 0x4, scoped, tag = 'scoped memory for torsion_mlp_forward.1']
    #allocation5 [shape = 'u8[65536]{0}', space=vmem, size = 0x10000, scoped, tag = 'input window, operand 11, single buffered']
    #allocation6 [shape = 's32[1]{0}', space=sflag, size = 0x4, scoped, tag = 'scoped memory for torsion_mlp_forward.1']
    #allocation7 [shape = 'u8[65536]{0}', space=vmem, size = 0x10000, scoped, tag = 'input window, operand 15, single buffered']
    #allocation8 [shape = 'u8[16384]{0}', space=vmem, size = 0x4000, scoped, tag = 'output window, operand 0, single buffered']
    %22 = vsyncpa [#allocation3], 0
    %23 = vsyncpa [#allocation6], 0
    %24 = vsyncpa [#allocation4], 0
    // Predicated region
    $region2: #{torsion_mlp_forward.1} parent=1 // pred_check
      _
    $region3: #{torsion_mlp_forward.1} parent=1 // pred_check_branch
      %26 = sbr.rel (0) target = $region5
    $region4: #{torsion_mlp_forward.1} parent=1 // pred_region
      _
    $region5: #{torsion_mlp_forward.1} parent=1 // pred_fallthru
      _
    // Predicated region
    $region6: #{torsion_mlp_forward.1} parent=1 // pred_check
      _
    $region7: #{torsion_mlp_forward.1} parent=1 // pred_check_branch
      %28 = sbr.rel (0) target = $region9
    $region8: #{torsion_mlp_forward.1} parent=1 // pred_region
      _
    $region9: #{torsion_mlp_forward.1} parent=1 // pred_fallthru
      _
    // Predicated region
    $region10: #{torsion_mlp_forward.1} parent=1 // pred_check
      _
    $region11: #{torsion_mlp_forward.1} parent=1 // pred_check_branch
      %30 = sbr.rel (0) target = $region13
    $region12: #{torsion_mlp_forward.1} parent=1 // pred_region
      _
    $region13: #{torsion_mlp_forward.1} parent=1 // pred_fallthru
      _
    // Predicated region
    $region14: #{torsion_mlp_forward.1} parent=1 // pred_check
      _
    $region15: #{torsion_mlp_forward.1} parent=1 // pred_check_branch
      %32 = sbr.rel (0) target = $region17
    $region16: #{torsion_mlp_forward.1} parent=1 // pred_region
      _
    $region17: #{torsion_mlp_forward.1} parent=1 // pred_fallthru
      _
    // Predicated region
    $region18: #{torsion_mlp_forward.1} parent=1 // pred_check
      _
    $region19: #{torsion_mlp_forward.1} parent=1 // pred_check_branch
      %34 = sbr.rel (0) target = $region21
    $region20: #{torsion_mlp_forward.1} parent=1 // pred_region
      _
    $region21: #{torsion_mlp_forward.1} parent=1 // pred_fallthru
      _
    // Predicated region
    $region22: #{torsion_mlp_forward.1} parent=1 // pred_check
      _
    $region23: #{torsion_mlp_forward.1} parent=1 // pred_check_branch
      %36 = sbr.rel (0) target = $region25
    $region24: #{torsion_mlp_forward.1} parent=1 // pred_region
      _
    $region25: #{torsion_mlp_forward.1} parent=1 // pred_fallthru
      _
    // Predicated region
    $region26: #{torsion_mlp_forward.1} parent=1 // pred_check
      _
    $region27: #{torsion_mlp_forward.1} parent=1 // pred_check_branch
      %38 = sbr.rel (0) target = $region29
    $region28: #{torsion_mlp_forward.1} parent=1 // pred_region
      _
    $region29: #{torsion_mlp_forward.1} parent=1 // pred_fallthru
      _
    // Predicated region
    $region30: #{torsion_mlp_forward.1} parent=1 // pred_check
      _
    $region31: #{torsion_mlp_forward.1} parent=1 // pred_check_branch
      %40 = sbr.rel (0) target = $region33
    $region32: #{torsion_mlp_forward.1} parent=1 // pred_region
      %s42 = ssub.s32 1024, 1024
      %43 = vsyncadd [#allocation3], %s42
      %s44 = sshll.u32 [#allocation2], 4
      %s45 = int_to_ptr.vmem [resolvable:$true] %s44
      %50 = dma.hbm_to_vmem [thread:$0]  %s7, 1024, %s45, [#allocation3], 64, 64, 4
    $region33: #{torsion_mlp_forward.1} parent=1 // pred_fallthru
      _
    // Predicated region
    $region34: #{torsion_mlp_forward.1} parent=1 // pred_check
      _
    $region35: #{torsion_mlp_forward.1} parent=1 // pred_check_branch
      %52 = sbr.rel (0) target = $region37
    $region36: #{torsion_mlp_forward.1} parent=1 // pred_region
      _
    $region37: #{torsion_mlp_forward.1} parent=1 // pred_fallthru
      _
    // Predicated region
    $region38: #{torsion_mlp_forward.1} parent=1 // pred_check
      _
    $region39: #{torsion_mlp_forward.1} parent=1 // pred_check_branch
      %54 = sbr.rel (0) target = $region41
    $region40: #{torsion_mlp_forward.1} parent=1 // pred_region
      _
    $region41: #{torsion_mlp_forward.1} parent=1 // pred_fallthru
      _
    // Predicated region
    $region42: #{torsion_mlp_forward.1} parent=1 // pred_check
      _
    $region43: #{torsion_mlp_forward.1} parent=1 // pred_check_branch
      %56 = sbr.rel (0) target = $region45
    $region44: #{torsion_mlp_forward.1} parent=1 // pred_region
      _
    $region45: #{torsion_mlp_forward.1} parent=1 // pred_fallthru
      _
    // Predicated region
    $region46: #{torsion_mlp_forward.1} parent=1 // pred_check
      _
    $region47: #{torsion_mlp_forward.1} parent=1 // pred_check_branch
      %58 = sbr.rel (0) target = $region49
    $region48: #{torsion_mlp_forward.1} parent=1 // pred_region
      %s60 = ssub.s32 2048, 2048
      %61 = vsyncadd [#allocation6], %s60
      %s62 = sshll.u32 [#allocation5], 4
      %s63 = int_to_ptr.vmem [resolvable:$true] %s62
      %68 = dma.hbm_to_vmem [thread:$0]  %s11, 2048, %s63, [#allocation6], 128, 128, 8
    $region49: #{torsion_mlp_forward.1} parent=1 // pred_fallthru
      _
    // Predicated region
    $region50: #{torsion_mlp_forward.1} parent=1 // pred_check
      _
    $region51: #{torsion_mlp_forward.1} parent=1 // pred_check_branch
      %70 = sbr.rel (0) target = $region53
    $region52: #{torsion_mlp_forward.1} parent=1 // pred_region
      _
    $region53: #{torsion_mlp_forward.1} parent=1 // pred_fallthru
      _
    // Predicated region
    $region54: #{torsion_mlp_forward.1} parent=1 // pred_check
      _
    $region55: #{torsion_mlp_forward.1} parent=1 // pred_check_branch
      %72 = sbr.rel (0) target = $region57
    $region56: #{torsion_mlp_forward.1} parent=1 // pred_region
      _
    $region57: #{torsion_mlp_forward.1} parent=1 // pred_fallthru
      _
    // Predicated region
    $region58: #{torsion_mlp_forward.1} parent=1 // pred_check
      _
    $region59: #{torsion_mlp_forward.1} parent=1 // pred_check_branch
      %74 = sbr.rel (0) target = $region61
    $region60: #{torsion_mlp_forward.1} parent=1 // pred_region
      _
    $region61: #{torsion_mlp_forward.1} parent=1 // pred_fallthru
      _
    // Predicated region
    $region62: #{torsion_mlp_forward.1} parent=1 // pred_check
      _
    $region63: #{torsion_mlp_forward.1} parent=1 // pred_check_branch
      %76 = sbr.rel (0) target = $region65
    $region64: #{torsion_mlp_forward.1} parent=1 // pred_region
      %s78 = ssub.s32 2048, 2048
      %79 = vsyncadd [#allocation6], %s78
      %s80 = sshll.u32 [#allocation7], 4
      %s81 = int_to_ptr.vmem [resolvable:$true] %s80
      %86 = dma.hbm_to_vmem [thread:$0]  %s15, 2048, %s81, [#allocation6], 64, 64, 4
    $region65: #{torsion_mlp_forward.1} parent=1 // pred_fallthru
      _
    // Predicated region
    $region66: #{torsion_mlp_forward.1} parent=1 // pred_check
      _
    $region67: #{torsion_mlp_forward.1} parent=1 // pred_check_branch
      %88 = sbr.rel (0) target = $region69
    $region68: #{torsion_mlp_forward.1} parent=1 // pred_region
      _
    $region69: #{torsion_mlp_forward.1} parent=1 // pred_fallthru
      _
    // Predicated region
    $region70: #{torsion_mlp_forward.1} parent=1 // pred_check
      _
    $region71: #{torsion_mlp_forward.1} parent=1 // pred_check_branch
      %90 = sbr.rel (0) target = $region73
    $region72: #{torsion_mlp_forward.1} parent=1 // pred_region
      %91 = dma.done [#allocation3], 1024
    $region73: #{torsion_mlp_forward.1} parent=1 // pred_fallthru
      _
    // Predicated region
    $region74: #{torsion_mlp_forward.1} parent=1 // pred_check
      _
    $region75: #{torsion_mlp_forward.1} parent=1 // pred_check_branch
      %93 = sbr.rel (0) target = $region77
    $region76: #{torsion_mlp_forward.1} parent=1 // pred_region
      %94 = dma.done [#allocation6], 2048
    $region77: #{torsion_mlp_forward.1} parent=1 // pred_fallthru
      _
    // Predicated region
    $region78: #{torsion_mlp_forward.1} parent=1 // pred_check
      _
    $region79: #{torsion_mlp_forward.1} parent=1 // pred_check_branch
      %96 = sbr.rel (0) target = $region81
    $region80: #{torsion_mlp_forward.1} parent=1 // pred_region
      %97 = dma.done [#allocation6], 2048
    $region81: #{torsion_mlp_forward.1} parent=1 // pred_fallthru
      _
    %v99 = vld [vmem:[%s0] sm:$0xff]
    %v100 = vld [vmem:[%s0 + $0x8] sm:$0xff]
    %v101 = vld [vmem:[%s0 + $0x10] sm:$0xff]
    %v102 = vld [vmem:[%s0 + $0x18] sm:$0xff]
    %v103 = vld [vmem:[%s1] sm:$0x1]
    %v104 = vld [vmem:[%s2] sm:$0x1]
    %v105 = vld [vmem:[%s3] sm:$0xf]
    %v106 = vld [vmem:[%s3 + $0x4] sm:$0xf]
    %v107 = vld [vmem:[%s3 + $0x8] sm:$0xf]
    %v108 = vld [vmem:[%s3 + $0xc] sm:$0xf]
    %v109 = vld [vmem:[%s3 + $0x10] sm:$0xf]
    %v110 = vld [vmem:[%s3 + $0x14] sm:$0xf]
    %v111 = vld [vmem:[%s3 + $0x18] sm:$0xf]
    %v112 = vld [vmem:[%s3 + $0x1c] sm:$0xf]
    %v113 = vld [vmem:[%s3 + $0x20] sm:$0xf]
    %v114 = vld [vmem:[%s3 + $0x24] sm:$0xf]
    %v115 = vld [vmem:[%s3 + $0x28] sm:$0xf]
    %v116 = vld [vmem:[%s3 + $0x2c] sm:$0xf]
    %v117 = vld [vmem:[%s3 + $0x30] sm:$0xf]
    %v118 = vld [vmem:[%s3 + $0x34] sm:$0xf]
    %v119 = vld [vmem:[%s3 + $0x38] sm:$0xf]
    %v120 = vld [vmem:[%s3 + $0x3c] sm:$0xf]
    %v121 = vld [vmem:[%s4] sm:$0x1]
    %vm122 = vcmp.gt.f32.partialorder %v99, 0.0
    %vm123 = vcmp.gt.f32.partialorder %v100, 0.0
    %vm124 = vcmp.gt.f32.partialorder %v101, 0.0
    %vm125 = vcmp.gt.f32.partialorder %v102, 0.0
    %v126 = vmin.f32 %v99, 0.0
    %v127 = vmin.f32 %v100, 0.0
    %v128 = vmin.f32 %v101, 0.0
    %v129 = vmin.f32 %v102, 0.0
    %v130 = vmul.f32 %v126, 1.442695
    %v131 = vpow.pop %v130
    %v132 = vmul.f32 %v127, 1.442695
    %v133 = vpow.pop %v132
    %v134 = vmul.f32 %v128, 1.442695
    %v135 = vpow.pop %v134
    %v136 = vmul.f32 %v129, 1.442695
    %v137 = vpow.pop %v136
    %v138 = vsub.f32 %v131, 1.0
    %v139 = vsub.f32 %v133, 1.0
    %v140 = vsub.f32 %v135, 1.0
    %v141 = vsub.f32 %v137, 1.0
    %v142 = vsel %vm122, %v99, %v138
    %v143 = vsel %vm123, %v100, %v139
    %v144 = vsel %vm124, %v101, %v140
    %v145 = vsel %vm125, %v102, %v141
    %v146 = vadd.f32 %v142, %v143
    %v147 = vadd.f32 %v146, %v144
    %v148 = vadd.f32 %v147, %v145
    %v149 = vrot.slane %v148, 4
    %v150 = vadd.f32 %v148, %v149
    %v151 = vrot.slane %v150, 2
    %v152 = vadd.f32 %v150, %v151
    %v153 = vrot.slane %v152, 1
    %v154 = vadd.f32 %v152, %v153
    %v155 = vrcp.pop 32.0
    %v156 = vmul.f32 %v154, %v155
    %v157 = vsub.f32 %v142, %v156
    %v158 = vsub.f32 %v143, %v156
    %v159 = vsub.f32 %v144, %v156
    %v160 = vsub.f32 %v145, %v156
    %v161 = vmul.f32 %v157, %v157
    %v162 = vmul.f32 %v158, %v158
    %v163 = vmul.f32 %v159, %v159
    %v164 = vmul.f32 %v160, %v160
    %v165 = vadd.f32 %v161, %v162
    %v166 = vadd.f32 %v165, %v163
    %v167 = vadd.f32 %v166, %v164
    %v168 = vrot.slane %v167, 4
    %v169 = vadd.f32 %v167, %v168
    %v170 = vrot.slane %v169, 2
    %v171 = vadd.f32 %v169, %v170
    %v172 = vrot.slane %v171, 1
    %v173 = vadd.f32 %v171, %v172
    %v174 = vmul.f32 %v173, %v155
    %v175 = vadd.f32 %v174, 1e-05
    %v176 = vrsqrt.pop %v175
    %v177 = vmul.f32 %v103, %v176
    %v179 = vlaneseq
    %v180 = vshrl.u32 %v179, 7
    %v181 = vsub.s32 0, %v180
    %v182 = vrot.slane %v177, %v181
    %v184 = vmul.f32 %v157, %v182
    %v185 = vmul.f32 %v158, %v182
    %v186 = vmul.f32 %v159, %v182
    %v187 = vmul.f32 %v160, %v182
    %v189 = vlaneseq
    %v190 = vshrl.u32 %v189, 7
    %v191 = vsub.s32 0, %v190
    %v192 = vrot.slane %v104, %v191
    %v194 = vadd.f32 %v184, %v192
    %v195 = vadd.f32 %v185, %v192
    %v196 = vadd.f32 %v186, %v192
    %v197 = vadd.f32 %v187, %v192
    %v198 = vpack.c.bf16 %v195, %v194
    %v199 = vpack.c.bf16 %v197, %v196
    %v201 = vlaneseq
    %v202 = vshrl.u32 %v201, 7
    %v203 = vsub.s32 0, %v202
    %v204 = vrot.slane %v121, %v203
    %v222 = vunpack.c.l.b16 %v105
    %v223 = vunpack.c.l.b16 %v106
    %v224 = vunpack.c.l.b16 %v107
    %v225 = vunpack.c.l.b16 %v108
    %v226 = vunpack.c.l.b16 %v109
    %v227 = vunpack.c.l.b16 %v110
    %v228 = vunpack.c.l.b16 %v111
    %v229 = vunpack.c.l.b16 %v112
    %v230 = vunpack.c.l.b16 %v113
    %v231 = vunpack.c.l.b16 %v114
    %v232 = vunpack.c.l.b16 %v115
    %v233 = vunpack.c.l.b16 %v116
    %v234 = vunpack.c.l.b16 %v117
    %v235 = vunpack.c.l.b16 %v118
    %v236 = vunpack.c.l.b16 %v119
    %v237 = vunpack.c.l.b16 %v120
    %v238 = vpack.c.b16 %v223, %v222
    %v239 = vpack.c.b16 %v225, %v224
    %v240 = vpack.c.b16 %v227, %v226
    %v241 = vpack.c.b16 %v229, %v228
    %v242 = vpack.c.b16 %v231, %v230
    %v243 = vpack.c.b16 %v233, %v232
    %v244 = vpack.c.b16 %v235, %v234
    %v245 = vpack.c.b16 %v237, %v236
    %254 = vmatprep.subr.bf16.mxu0 0
    %255 = vmatpush1.bf16.msra.mxu0 %v238
    %256 = vmatprep.subr.bf16.mxu0 0
    %257 = vmatpush1.bf16.msra.mxu0 %v239
    %258 = vmatprep.subr.bf16.mxu0 0
    %259 = vmatpush1.bf16.msra.mxu0 %v240
    %260 = vmatprep.subr.bf16.mxu0 0
    %261 = vmatpush1.bf16.msra.mxu0 %v241
    %262 = vmatprep.subr.bf16.mxu0 0
    %263 = vmatpush1.bf16.msra.mxu0 %v242
    %264 = vmatprep.subr.bf16.mxu0 0
    %265 = vmatpush1.bf16.msra.mxu0 %v243
    %266 = vmatprep.subr.bf16.mxu0 0
    %267 = vmatpush1.bf16.msra.mxu0 %v244
    %268 = vmatprep.subr.bf16.mxu0 0
    %269 = vmatpush1.bf16.msra.mxu0 %v245
    %270 = vmatprep.subr.bf16.mxu0 0
    %271 = vmatpush1.bf16.msra.mxu0 0
    %272 = vmatprep.subr.bf16.mxu0 0
    %273 = vmatpush1.bf16.msra.mxu0 0
    %274 = vmatprep.subr.bf16.mxu0 0
    %275 = vmatpush1.bf16.msra.mxu0 0
    %276 = vmatprep.subr.bf16.mxu0 0
    %277 = vmatpush1.bf16.msra.mxu0 0
    %278 = vmatprep.subr.bf16.mxu0 0
    %279 = vmatpush1.bf16.msra.mxu0 0
    %280 = vmatprep.subr.bf16.mxu0 0
    %281 = vmatpush1.bf16.msra.mxu0 0
    %282 = vmatprep.subr.bf16.mxu0 0
    %283 = vmatpush1.bf16.msra.mxu0 0
    %284 = vmatprep.subr.bf16.mxu0 0
    %285 = vmatpush1.bf16.msra.mxu0 0
    %286 = vmatprep.mubr.bf16.mxu0 0
    %287 = vmatmul.mubr.bf16.gmra.mrb[0].mxu0 %v198
    %v288 = vpop.f32.mrb[0].mxu0
    %v289 = vadd.f32 %v204, %v288
    %v290 = vpop.f32.mrb[0].mxu0
    %v291 = vpop.f32.mrb[0].mxu0
    %v292 = vadd.f32 %v204, %v291
    %v293 = vpop.f32.mrb[0].mxu0
    %294 = vmatprep.mubr.bf16.mxu0 0
    %295 = vmatmul.mubr.bf16.gmra.mrb[0].mxu0 %v199
    %v296 = vpop.f32.mrb[0].mxu0
    %v297 = vadd.f32 %v204, %v296
    %v298 = vpop.f32.mrb[0].mxu0
    %v299 = vpop.f32.mrb[0].mxu0
    %v300 = vadd.f32 %v204, %v299
    %v301 = vpop.f32.mrb[0].mxu0
    %302 = vdwg.mxu0
    %v303 = vld [vmem:[%s5] sm:$0x1]
    %v304 = vld [vmem:[%s6] sm:$0x1]
    %v305 = vld [vmem:[#allocation2] sm:$0xf]
    %v306 = vld [vmem:[#allocation2 + $0x4] sm:$0xf]
    %v307 = vld [vmem:[#allocation2 + $0x8] sm:$0xf]
    %v308 = vld [vmem:[#allocation2 + $0xc] sm:$0xf]
    %v309 = vld [vmem:[#allocation2 + $0x10] sm:$0xf]
    %v310 = vld [vmem:[#allocation2 + $0x14] sm:$0xf]
    %v311 = vld [vmem:[#allocation2 + $0x18] sm:$0xf]
    %v312 = vld [vmem:[#allocation2 + $0x1c] sm:$0xf]
    %v313 = vld [vmem:[#allocation2 + $0x20] sm:$0xf]
    %v314 = vld [vmem:[#allocation2 + $0x24] sm:$0xf]
    %v315 = vld [vmem:[#allocation2 + $0x28] sm:$0xf]
    %v316 = vld [vmem:[#allocation2 + $0x2c] sm:$0xf]
    %v317 = vld [vmem:[#allocation2 + $0x30] sm:$0xf]
    %v318 = vld [vmem:[#allocation2 + $0x34] sm:$0xf]
    %v319 = vld [vmem:[#allocation2 + $0x38] sm:$0xf]
    %v320 = vld [vmem:[#allocation2 + $0x3c] sm:$0xf]
    %v321 = vld [vmem:[%s8] sm:$0x1]
    %vm322 = vcmp.gt.f32.partialorder %v289, 0.0
    %vm323 = vcmp.gt.f32.partialorder %v292, 0.0
    %vm324 = vcmp.gt.f32.partialorder %v297, 0.0
    %vm325 = vcmp.gt.f32.partialorder %v300, 0.0
    %v326 = vmin.f32 %v289, 0.0
    %v327 = vmin.f32 %v292, 0.0
    %v328 = vmin.f32 %v297, 0.0
    %v329 = vmin.f32 %v300, 0.0
    %v330 = vmul.f32 %v326, 1.442695
    %v331 = vpow.pop %v330
    %v332 = vmul.f32 %v327, 1.442695
    %v333 = vpow.pop %v332
    %v334 = vmul.f32 %v328, 1.442695
    %v335 = vpow.pop %v334
    %v336 = vmul.f32 %v329, 1.442695
    %v337 = vpow.pop %v336
    %v338 = vsub.f32 %v331, 1.0
    %v339 = vsub.f32 %v333, 1.0
    %v340 = vsub.f32 %v335, 1.0
    %v341 = vsub.f32 %v337, 1.0
    %v342 = vsel %vm322, %v289, %v338
    %v343 = vsel %vm323, %v292, %v339
    %v344 = vsel %vm324, %v297, %v340
    %v345 = vsel %vm325, %v300, %v341
    %v346 = vadd.f32 %v342, %v343
    %v347 = vadd.f32 %v346, %v344
    %v348 = vadd.f32 %v347, %v345
    %v349 = vrot.slane %v348, 4
    %v350 = vadd.f32 %v348, %v349
    %v351 = vrot.slane %v350, 2
    %v352 = vadd.f32 %v350, %v351
    %v353 = vrot.slane %v352, 1
    %v354 = vadd.f32 %v352, %v353
    %v355 = vmul.f32 %v354, %v155
    %v356 = vsub.f32 %v342, %v355
    %v357 = vsub.f32 %v343, %v355
    %v358 = vsub.f32 %v344, %v355
    %v359 = vsub.f32 %v345, %v355
    %v360 = vmul.f32 %v356, %v356
    %v361 = vmul.f32 %v357, %v357
    %v362 = vmul.f32 %v358, %v358
    %v363 = vmul.f32 %v359, %v359
    %v364 = vadd.f32 %v360, %v361
    %v365 = vadd.f32 %v364, %v362
    %v366 = vadd.f32 %v365, %v363
    %v367 = vrot.slane %v366, 4
    %v368 = vadd.f32 %v366, %v367
    %v369 = vrot.slane %v368, 2
    %v370 = vadd.f32 %v368, %v369
    %v371 = vrot.slane %v370, 1
    %v372 = vadd.f32 %v370, %v371
    %v373 = vmul.f32 %v372, %v155
    %v374 = vadd.f32 %v373, 1e-05
    %v375 = vrsqrt.pop %v374
    %v376 = vmul.f32 %v303, %v375
    %v378 = vlaneseq
    %v379 = vshrl.u32 %v378, 7
    %v380 = vsub.s32 0, %v379
    %v381 = vrot.slane %v376, %v380
    %v383 = vmul.f32 %v356, %v381
    %v384 = vmul.f32 %v357, %v381
    %v385 = vmul.f32 %v358, %v381
    %v386 = vmul.f32 %v359, %v381
    %v388 = vlaneseq
    %v389 = vshrl.u32 %v388, 7
    %v390 = vsub.s32 0, %v389
    %v391 = vrot.slane %v304, %v390
    %v393 = vadd.f32 %v383, %v391
    %v394 = vadd.f32 %v384, %v391
    %v395 = vadd.f32 %v385, %v391
    %v396 = vadd.f32 %v386, %v391
    %v397 = vpack.c.bf16 %v394, %v393
    %v398 = vpack.c.bf16 %v396, %v395
    %v400 = vlaneseq
    %v401 = vshrl.u32 %v400, 7
    %v402 = vsub.s32 0, %v401
    %v403 = vrot.slane %v321, %v402
    %v421 = vunpack.c.l.b16 %v305
    %v422 = vunpack.c.l.b16 %v306
    %v423 = vunpack.c.l.b16 %v307
    %v424 = vunpack.c.l.b16 %v308
    %v425 = vunpack.c.l.b16 %v309
    %v426 = vunpack.c.l.b16 %v310
    %v427 = vunpack.c.l.b16 %v311
    %v428 = vunpack.c.l.b16 %v312
    %v429 = vunpack.c.l.b16 %v313
    %v430 = vunpack.c.l.b16 %v314
    %v431 = vunpack.c.l.b16 %v315
    %v432 = vunpack.c.l.b16 %v316
    %v433 = vunpack.c.l.b16 %v317
    %v434 = vunpack.c.l.b16 %v318
    %v435 = vunpack.c.l.b16 %v319
    %v436 = vunpack.c.l.b16 %v320
    %v437 = vpack.c.b16 %v422, %v421
    %v438 = vpack.c.b16 %v424, %v423
    %v439 = vpack.c.b16 %v426, %v425
    %v440 = vpack.c.b16 %v428, %v427
    %v441 = vpack.c.b16 %v430, %v429
    %v442 = vpack.c.b16 %v432, %v431
    %v443 = vpack.c.b16 %v434, %v433
    %v444 = vpack.c.b16 %v436, %v435
    %453 = vmatprep.subr.bf16.mxu0 0
    %454 = vmatpush1.bf16.msra.mxu0 %v437
    %455 = vmatprep.subr.bf16.mxu0 0
    %456 = vmatpush1.bf16.msra.mxu0 %v438
    %457 = vmatprep.subr.bf16.mxu0 0
    %458 = vmatpush1.bf16.msra.mxu0 %v439
    %459 = vmatprep.subr.bf16.mxu0 0
    %460 = vmatpush1.bf16.msra.mxu0 %v440
    %461 = vmatprep.subr.bf16.mxu0 0
    %462 = vmatpush1.bf16.msra.mxu0 %v441
    %463 = vmatprep.subr.bf16.mxu0 0
    %464 = vmatpush1.bf16.msra.mxu0 %v442
    %465 = vmatprep.subr.bf16.mxu0 0
    %466 = vmatpush1.bf16.msra.mxu0 %v443
    %467 = vmatprep.subr.bf16.mxu0 0
    %468 = vmatpush1.bf16.msra.mxu0 %v444
    %469 = vmatprep.subr.bf16.mxu0 0
    %470 = vmatpush1.bf16.msra.mxu0 0
    %471 = vmatprep.subr.bf16.mxu0 0
    %472 = vmatpush1.bf16.msra.mxu0 0
    %473 = vmatprep.subr.bf16.mxu0 0
    %474 = vmatpush1.bf16.msra.mxu0 0
    %475 = vmatprep.subr.bf16.mxu0 0
    %476 = vmatpush1.bf16.msra.mxu0 0
    %477 = vmatprep.subr.bf16.mxu0 0
    %478 = vmatpush1.bf16.msra.mxu0 0
    %479 = vmatprep.subr.bf16.mxu0 0
    %480 = vmatpush1.bf16.msra.mxu0 0
    %481 = vmatprep.subr.bf16.mxu0 0
    %482 = vmatpush1.bf16.msra.mxu0 0
    %483 = vmatprep.subr.bf16.mxu0 0
    %484 = vmatpush1.bf16.msra.mxu0 0
    %485 = vmatprep.mubr.bf16.mxu0 0
    %486 = vmatmul.mubr.bf16.gmra.mrb[0].mxu0 %v397
    %v487 = vpop.f32.mrb[0].mxu0
    %v488 = vadd.f32 %v403, %v487
    %v489 = vpop.f32.mrb[0].mxu0
    %v490 = vpop.f32.mrb[0].mxu0
    %v491 = vadd.f32 %v403, %v490
    %v492 = vpop.f32.mrb[0].mxu0
    %493 = vmatprep.mubr.bf16.mxu0 0
    %494 = vmatmul.mubr.bf16.gmra.mrb[0].mxu0 %v398
    %v495 = vpop.f32.mrb[0].mxu0
    %v496 = vadd.f32 %v403, %v495
    %v497 = vpop.f32.mrb[0].mxu0
    %v498 = vpop.f32.mrb[0].mxu0
    %v499 = vadd.f32 %v403, %v498
    %v500 = vpop.f32.mrb[0].mxu0
    %501 = vdwg.mxu0
    %v502 = vld [vmem:[%s9] sm:$0x1]
    %v503 = vld [vmem:[%s10] sm:$0x1]
    %v504 = vld [vmem:[#allocation5] sm:$0xff]
    %v505 = vld [vmem:[#allocation5 + $0x8] sm:$0xff]
    %v506 = vld [vmem:[#allocation5 + $0x10] sm:$0xff]
    %v507 = vld [vmem:[#allocation5 + $0x18] sm:$0xff]
    %v508 = vld [vmem:[#allocation5 + $0x20] sm:$0xff]
    %v509 = vld [vmem:[#allocation5 + $0x28] sm:$0xff]
    %v510 = vld [vmem:[#allocation5 + $0x30] sm:$0xff]
    %v511 = vld [vmem:[#allocation5 + $0x38] sm:$0xff]
    %v512 = vld [vmem:[#allocation5 + $0x40] sm:$0xff]
    %v513 = vld [vmem:[#allocation5 + $0x48] sm:$0xff]
    %v514 = vld [vmem:[#allocation5 + $0x50] sm:$0xff]
    %v515 = vld [vmem:[#allocation5 + $0x58] sm:$0xff]
    %v516 = vld [vmem:[#allocation5 + $0x60] sm:$0xff]
    %v517 = vld [vmem:[#allocation5 + $0x68] sm:$0xff]
    %v518 = vld [vmem:[#allocation5 + $0x70] sm:$0xff]
    %v519 = vld [vmem:[#allocation5 + $0x78] sm:$0xff]
    %v520 = vld [vmem:[%s12] sm:$0x3]
    %vm521 = vcmp.gt.f32.partialorder %v488, 0.0
    %vm522 = vcmp.gt.f32.partialorder %v491, 0.0
    %vm523 = vcmp.gt.f32.partialorder %v496, 0.0
    %vm524 = vcmp.gt.f32.partialorder %v499, 0.0
    %v525 = vmin.f32 %v488, 0.0
    %v526 = vmin.f32 %v491, 0.0
    %v527 = vmin.f32 %v496, 0.0
    %v528 = vmin.f32 %v499, 0.0
    %v529 = vmul.f32 %v525, 1.442695
    %v530 = vpow.pop %v529
    %v531 = vmul.f32 %v526, 1.442695
    %v532 = vpow.pop %v531
    %v533 = vmul.f32 %v527, 1.442695
    %v534 = vpow.pop %v533
    %v535 = vmul.f32 %v528, 1.442695
    %v536 = vpow.pop %v535
    %v537 = vsub.f32 %v530, 1.0
    %v538 = vsub.f32 %v532, 1.0
    %v539 = vsub.f32 %v534, 1.0
    %v540 = vsub.f32 %v536, 1.0
    %v541 = vsel %vm521, %v488, %v537
    %v542 = vsel %vm522, %v491, %v538
    %v543 = vsel %vm523, %v496, %v539
    %v544 = vsel %vm524, %v499, %v540
    %v545 = vadd.f32 %v541, %v542
    %v546 = vadd.f32 %v545, %v543
    %v547 = vadd.f32 %v546, %v544
    %v548 = vrot.slane %v547, 4
    %v549 = vadd.f32 %v547, %v548
    %v550 = vrot.slane %v549, 2
    %v551 = vadd.f32 %v549, %v550
    %v552 = vrot.slane %v551, 1
    %v553 = vadd.f32 %v551, %v552
    %v554 = vmul.f32 %v553, %v155
    %v555 = vsub.f32 %v541, %v554
    %v556 = vsub.f32 %v542, %v554
    %v557 = vsub.f32 %v543, %v554
    %v558 = vsub.f32 %v544, %v554
    %v559 = vmul.f32 %v555, %v555
    %v560 = vmul.f32 %v556, %v556
    %v561 = vmul.f32 %v557, %v557
    %v562 = vmul.f32 %v558, %v558
    %v563 = vadd.f32 %v559, %v560
    %v564 = vadd.f32 %v563, %v561
    %v565 = vadd.f32 %v564, %v562
    %v566 = vrot.slane %v565, 4
    %v567 = vadd.f32 %v565, %v566
    %v568 = vrot.slane %v567, 2
    %v569 = vadd.f32 %v567, %v568
    %v570 = vrot.slane %v569, 1
    %v571 = vadd.f32 %v569, %v570
    %v572 = vmul.f32 %v571, %v155
    %v573 = vadd.f32 %v572, 1e-05
    %v574 = vrsqrt.pop %v573
    %v575 = vmul.f32 %v502, %v574
    %v577 = vlaneseq
    %v578 = vshrl.u32 %v577, 7
    %v579 = vsub.s32 0, %v578
    %v580 = vrot.slane %v575, %v579
    %v582 = vmul.f32 %v555, %v580
    %v583 = vmul.f32 %v556, %v580
    %v584 = vmul.f32 %v557, %v580
    %v585 = vmul.f32 %v558, %v580
    %v587 = vlaneseq
    %v588 = vshrl.u32 %v587, 7
    %v589 = vsub.s32 0, %v588
    %v590 = vrot.slane %v503, %v589
    %v592 = vadd.f32 %v582, %v590
    %v593 = vadd.f32 %v583, %v590
    %v594 = vadd.f32 %v584, %v590
    %v595 = vadd.f32 %v585, %v590
    %v596 = vpack.c.bf16 %v593, %v592
    %v597 = vpack.c.bf16 %v595, %v594
    %v599 = vlaneseq
    %v600 = vshrl.u32 %v599, 7
    %v601 = vsub.s32 0, %v600
    %v602 = vrot.slane %v520, %v601
    %v603 = vlaneseq
    %v604 = vshrl.u32 %v603, 7
    %v605 = vsub.s32 1, %v604
    %v606 = vrot.slane %v520, %v605
    %v625 = vunpack.c.l.b16 %v504
    %v626 = vunpack.c.h.b16 %v504
    %v627 = vunpack.c.l.b16 %v505
    %v628 = vunpack.c.h.b16 %v505
    %v629 = vunpack.c.l.b16 %v506
    %v630 = vunpack.c.h.b16 %v506
    %v631 = vunpack.c.l.b16 %v507
    %v632 = vunpack.c.h.b16 %v507
    %v633 = vunpack.c.l.b16 %v508
    %v634 = vunpack.c.h.b16 %v508
    %v635 = vunpack.c.l.b16 %v509
    %v636 = vunpack.c.h.b16 %v509
    %v637 = vunpack.c.l.b16 %v510
    %v638 = vunpack.c.h.b16 %v510
    %v639 = vunpack.c.l.b16 %v511
    %v640 = vunpack.c.h.b16 %v511
    %v641 = vunpack.c.l.b16 %v512
    %v642 = vunpack.c.h.b16 %v512
    %v643 = vunpack.c.l.b16 %v513
    %v644 = vunpack.c.h.b16 %v513
    %v645 = vunpack.c.l.b16 %v514
    %v646 = vunpack.c.h.b16 %v514
    %v647 = vunpack.c.l.b16 %v515
    %v648 = vunpack.c.h.b16 %v515
    %v649 = vunpack.c.l.b16 %v516
    %v650 = vunpack.c.h.b16 %v516
    %v651 = vunpack.c.l.b16 %v517
    %v652 = vunpack.c.h.b16 %v517
    %v653 = vunpack.c.l.b16 %v518
    %v654 = vunpack.c.h.b16 %v518
    %v655 = vunpack.c.l.b16 %v519
    %v656 = vunpack.c.h.b16 %v519
    %v657 = vpack.c.b16 %v627, %v625
    %v658 = vpack.c.b16 %v628, %v626
    %v659 = vpack.c.b16 %v631, %v629
    %v660 = vpack.c.b16 %v632, %v630
    %v661 = vpack.c.b16 %v635, %v633
    %v662 = vpack.c.b16 %v636, %v634
    %v663 = vpack.c.b16 %v639, %v637
    %v664 = vpack.c.b16 %v640, %v638
    %v665 = vpack.c.b16 %v643, %v641
    %v666 = vpack.c.b16 %v644, %v642
    %v667 = vpack.c.b16 %v647, %v645
    %v668 = vpack.c.b16 %v648, %v646
    %v669 = vpack.c.b16 %v651, %v649
    %v670 = vpack.c.b16 %v652, %v650
    %v671 = vpack.c.b16 %v655, %v653
    %v672 = vpack.c.b16 %v656, %v654
    %689 = vmatprep.subr.bf16.mxu0 %v658
    %690 = vmatpush1.bf16.msra.mxu0 %v657
    %691 = vmatprep.subr.bf16.mxu0 %v660
    %692 = vmatpush1.bf16.msra.mxu0 %v659
    %693 = vmatprep.subr.bf16.mxu0 %v662
    %694 = vmatpush1.bf16.msra.mxu0 %v661
    %695 = vmatprep.subr.bf16.mxu0 %v664
    %696 = vmatpush1.bf16.msra.mxu0 %v663
    %697 = vmatprep.subr.bf16.mxu0 %v666
    %698 = vmatpush1.bf16.msra.mxu0 %v665
    %699 = vmatprep.subr.bf16.mxu0 %v668
    %700 = vmatpush1.bf16.msra.mxu0 %v667
    %701 = vmatprep.subr.bf16.mxu0 %v670
    %702 = vmatpush1.bf16.msra.mxu0 %v669
    %703 = vmatprep.subr.bf16.mxu0 %v672
    %704 = vmatpush1.bf16.msra.mxu0 %v671
    %705 = vmatprep.subr.bf16.mxu0 0
    %706 = vmatpush1.bf16.msra.mxu0 0
    %707 = vmatprep.subr.bf16.mxu0 0
    %708 = vmatpush1.bf16.msra.mxu0 0
    %709 = vmatprep.subr.bf16.mxu0 0
    %710 = vmatpush1.bf16.msra.mxu0 0
    %711 = vmatprep.subr.bf16.mxu0 0
    %712 = vmatpush1.bf16.msra.mxu0 0
    %713 = vmatprep.subr.bf16.mxu0 0
    %714 = vmatpush1.bf16.msra.mxu0 0
    %715 = vmatprep.subr.bf16.mxu0 0
    %716 = vmatpush1.bf16.msra.mxu0 0
    %717 = vmatprep.subr.bf16.mxu0 0
    %718 = vmatpush1.bf16.msra.mxu0 0
    %719 = vmatprep.subr.bf16.mxu0 0
    %720 = vmatpush1.bf16.msra.mxu0 0
    %721 = vmatprep.mubr.bf16.mxu0 0
    %722 = vmatmul.mubr.bf16.gmra.mrb[0].mxu0 %v596
    %v723 = vpop.f32.mrb[0].mxu0
    %v724 = vadd.f32 %v602, %v723
    %v725 = vpop.f32.mrb[0].mxu0
    %v726 = vadd.f32 %v606, %v725
    %v727 = vpop.f32.mrb[0].mxu0
    %v728 = vadd.f32 %v602, %v727
    %v729 = vpop.f32.mrb[0].mxu0
    %v730 = vadd.f32 %v606, %v729
    %731 = vmatprep.mubr.bf16.mxu0 0
    %732 = vmatmul.mubr.bf16.gmra.mrb[0].mxu0 %v597
    %v733 = vpop.f32.mrb[0].mxu0
    %v734 = vadd.f32 %v602, %v733
    %v735 = vpop.f32.mrb[0].mxu0
    %v736 = vadd.f32 %v606, %v735
    %v737 = vpop.f32.mrb[0].mxu0
    %v738 = vadd.f32 %v602, %v737
    %v739 = vpop.f32.mrb[0].mxu0
    %v740 = vadd.f32 %v606, %v739
    %741 = vdwg.mxu0
    %v742 = vld [vmem:[%s13] sm:$0x3]
    %v743 = vld [vmem:[%s14] sm:$0x3]
    %v744 = vld [vmem:[#allocation7] sm:$0xf]
    %v745 = vld [vmem:[#allocation7 + $0x4] sm:$0xf]
    %v746 = vld [vmem:[#allocation7 + $0x8] sm:$0xf]
    %v747 = vld [vmem:[#allocation7 + $0xc] sm:$0xf]
    %v748 = vld [vmem:[#allocation7 + $0x10] sm:$0xf]
    %v749 = vld [vmem:[#allocation7 + $0x14] sm:$0xf]
    %v750 = vld [vmem:[#allocation7 + $0x18] sm:$0xf]
    %v751 = vld [vmem:[#allocation7 + $0x1c] sm:$0xf]
    %v752 = vld [vmem:[#allocation7 + $0x20] sm:$0xf]
    %v753 = vld [vmem:[#allocation7 + $0x24] sm:$0xf]
    %v754 = vld [vmem:[#allocation7 + $0x28] sm:$0xf]
    %v755 = vld [vmem:[#allocation7 + $0x2c] sm:$0xf]
    %v756 = vld [vmem:[#allocation7 + $0x30] sm:$0xf]
    %v757 = vld [vmem:[#allocation7 + $0x34] sm:$0xf]
    %v758 = vld [vmem:[#allocation7 + $0x38] sm:$0xf]
    %v759 = vld [vmem:[#allocation7 + $0x3c] sm:$0xf]
    %v760 = vld [vmem:[#allocation7 + $0x40] sm:$0xf]
    %v761 = vld [vmem:[#allocation7 + $0x44] sm:$0xf]
    %v762 = vld [vmem:[#allocation7 + $0x48] sm:$0xf]
    %v763 = vld [vmem:[#allocation7 + $0x4c] sm:$0xf]
    %v764 = vld [vmem:[#allocation7 + $0x50] sm:$0xf]
    %v765 = vld [vmem:[#allocation7 + $0x54] sm:$0xf]
    %v766 = vld [vmem:[#allocation7 + $0x58] sm:$0xf]
    %v767 = vld [vmem:[#allocation7 + $0x5c] sm:$0xf]
    %v768 = vld [vmem:[#allocation7 + $0x60] sm:$0xf]
    %v769 = vld [vmem:[#allocation7 + $0x64] sm:$0xf]
    %v770 = vld [vmem:[#allocation7 + $0x68] sm:$0xf]
    %v771 = vld [vmem:[#allocation7 + $0x6c] sm:$0xf]
    %v772 = vld [vmem:[#allocation7 + $0x70] sm:$0xf]
    %v773 = vld [vmem:[#allocation7 + $0x74] sm:$0xf]
    %v774 = vld [vmem:[#allocation7 + $0x78] sm:$0xf]
    %v775 = vld [vmem:[#allocation7 + $0x7c] sm:$0xf]
    %v776 = vld [vmem:[%s16] sm:$0x1]
    %vm777 = vcmp.gt.f32.partialorder %v724, 0.0
    %vm778 = vcmp.gt.f32.partialorder %v726, 0.0
    %vm779 = vcmp.gt.f32.partialorder %v728, 0.0
    %vm780 = vcmp.gt.f32.partialorder %v730, 0.0
    %vm781 = vcmp.gt.f32.partialorder %v734, 0.0
    %vm782 = vcmp.gt.f32.partialorder %v736, 0.0
    %vm783 = vcmp.gt.f32.partialorder %v738, 0.0
    %vm784 = vcmp.gt.f32.partialorder %v740, 0.0
    %v785 = vmin.f32 %v724, 0.0
    %v786 = vmin.f32 %v726, 0.0
    %v787 = vmin.f32 %v728, 0.0
    %v788 = vmin.f32 %v730, 0.0
    %v789 = vmin.f32 %v734, 0.0
    %v790 = vmin.f32 %v736, 0.0
    %v791 = vmin.f32 %v738, 0.0
    %v792 = vmin.f32 %v740, 0.0
    %v793 = vmul.f32 %v785, 1.442695
    %v794 = vpow.pop %v793
    %v795 = vmul.f32 %v786, 1.442695
    %v796 = vpow.pop %v795
    %v797 = vmul.f32 %v787, 1.442695
    %v798 = vpow.pop %v797
    %v799 = vmul.f32 %v788, 1.442695
    %v800 = vpow.pop %v799
    %v801 = vmul.f32 %v789, 1.442695
    %v802 = vpow.pop %v801
    %v803 = vmul.f32 %v790, 1.442695
    %v804 = vpow.pop %v803
    %v805 = vmul.f32 %v791, 1.442695
    %v806 = vpow.pop %v805
    %v807 = vmul.f32 %v792, 1.442695
    %v808 = vpow.pop %v807
    %v809 = vsub.f32 %v794, 1.0
    %v810 = vsub.f32 %v796, 1.0
    %v811 = vsub.f32 %v798, 1.0
    %v812 = vsub.f32 %v800, 1.0
    %v813 = vsub.f32 %v802, 1.0
    %v814 = vsub.f32 %v804, 1.0
    %v815 = vsub.f32 %v806, 1.0
    %v816 = vsub.f32 %v808, 1.0
    %v817 = vsel %vm777, %v724, %v809
    %v818 = vsel %vm778, %v726, %v810
    %v819 = vsel %vm779, %v728, %v811
    %v820 = vsel %vm780, %v730, %v812
    %v821 = vsel %vm781, %v734, %v813
    %v822 = vsel %vm782, %v736, %v814
    %v823 = vsel %vm783, %v738, %v815
    %v824 = vsel %vm784, %v740, %v816
    %v825 = vadd.f32 %v817, %v819
    %v826 = vadd.f32 %v825, %v821
    %v827 = vadd.f32 %v826, %v823
    %v828 = vrot.slane %v827, 4
    %v829 = vadd.f32 %v827, %v828
    %v830 = vrot.slane %v829, 2
    %v831 = vadd.f32 %v829, %v830
    %v832 = vrot.slane %v831, 1
    %v833 = vadd.f32 %v831, %v832
    %v834 = vadd.f32 %v818, %v820
    %v835 = vadd.f32 %v834, %v822
    %v836 = vadd.f32 %v835, %v824
    %v837 = vrot.slane %v836, 4
    %v838 = vadd.f32 %v836, %v837
    %v839 = vrot.slane %v838, 2
    %v840 = vadd.f32 %v838, %v839
    %v841 = vrot.slane %v840, 1
    %v842 = vadd.f32 %v840, %v841
    %v843 = vmul.f32 %v833, %v155
    %v844 = vmul.f32 %v842, %v155
    %v845 = vsub.f32 %v817, %v843
    %v846 = vsub.f32 %v818, %v844
    %v847 = vsub.f32 %v819, %v843
    %v848 = vsub.f32 %v820, %v844
    %v849 = vsub.f32 %v821, %v843
    %v850 = vsub.f32 %v822, %v844
    %v851 = vsub.f32 %v823, %v843
    %v852 = vsub.f32 %v824, %v844
    %v853 = vmul.f32 %v845, %v845
    %v854 = vmul.f32 %v846, %v846
    %v855 = vmul.f32 %v847, %v847
    %v856 = vmul.f32 %v848, %v848
    %v857 = vmul.f32 %v849, %v849
    %v858 = vmul.f32 %v850, %v850
    %v859 = vmul.f32 %v851, %v851
    %v860 = vmul.f32 %v852, %v852
    %v861 = vadd.f32 %v853, %v855
    %v862 = vadd.f32 %v861, %v857
    %v863 = vadd.f32 %v862, %v859
    %v864 = vrot.slane %v863, 4
    %v865 = vadd.f32 %v863, %v864
    %v866 = vrot.slane %v865, 2
    %v867 = vadd.f32 %v865, %v866
    %v868 = vrot.slane %v867, 1
    %v869 = vadd.f32 %v867, %v868
    %v870 = vadd.f32 %v854, %v856
    %v871 = vadd.f32 %v870, %v858
    %v872 = vadd.f32 %v871, %v860
    %v873 = vrot.slane %v872, 4
    %v874 = vadd.f32 %v872, %v873
    %v875 = vrot.slane %v874, 2
    %v876 = vadd.f32 %v874, %v875
    %v877 = vrot.slane %v876, 1
    %v878 = vadd.f32 %v876, %v877
    %v879 = vmul.f32 %v869, %v155
    %v880 = vmul.f32 %v878, %v155
    %v881 = vadd.f32 %v879, 1e-05
    %v882 = vadd.f32 %v880, 1e-05
    %v883 = vrsqrt.pop %v881
    %v884 = vrsqrt.pop %v882
    %v887 = vcombine.low %v883, %v884
    %v889 = vunpack.c.l.s4 1966171168
    %v890 = vunpack.c.0.s8 %v889
    %v891 = vlaneseq
    %v892 = vshrl.u32 %v891, 7
    %v893 = vsub.s32 %v890, %v892
    %v894 = vrot.slane %v887, %v893
    %v896 = vunpack.c.l.s4 1966171168
    %v897 = vunpack.c.0.s8 %v896
    %v898 = vlaneseq
    %v899 = vshrl.u32 %v898, 7
    %v900 = vsub.s32 %v897, %v899
    %v901 = vrot.slane %v894, %v900
    %v903 = vmul.f32 %v742, %v901
    %v905 = vlaneseq
    %v906 = vshrl.u32 %v905, 7
    %v907 = vsub.s32 0, %v906
    %v908 = vrot.slane %v903, %v907
    %v909 = vlaneseq
    %v910 = vshrl.u32 %v909, 7
    %v911 = vsub.s32 1, %v910
    %v912 = vrot.slane %v903, %v911
    %v915 = vmul.f32 %v845, %v908
    %v916 = vmul.f32 %v846, %v912
    %v917 = vmul.f32 %v847, %v908
    %v918 = vmul.f32 %v848, %v912
    %v919 = vmul.f32 %v849, %v908
    %v920 = vmul.f32 %v850, %v912
    %v921 = vmul.f32 %v851, %v908
    %v922 = vmul.f32 %v852, %v912
    %v924 = vlaneseq
    %v925 = vshrl.u32 %v924, 7
    %v926 = vsub.s32 0, %v925
    %v927 = vrot.slane %v743, %v926
    %v928 = vlaneseq
    %v929 = vshrl.u32 %v928, 7
    %v930 = vsub.s32 1, %v929
    %v931 = vrot.slane %v743, %v930
    %v934 = vadd.f32 %v915, %v927
    %v935 = vadd.f32 %v916, %v931
    %v936 = vadd.f32 %v917, %v927
    %v937 = vadd.f32 %v918, %v931
    %v938 = vadd.f32 %v919, %v927
    %v939 = vadd.f32 %v920, %v931
    %v940 = vadd.f32 %v921, %v927
    %v941 = vadd.f32 %v922, %v931
    %v942 = vpack.c.bf16 %v936, %v934
    %v943 = vpack.c.bf16 %v937, %v935
    %v944 = vpack.c.bf16 %v940, %v938
    %v945 = vpack.c.bf16 %v941, %v939
    %v947 = vlaneseq
    %v948 = vshrl.u32 %v947, 7
    %v949 = vsub.s32 0, %v948
    %v950 = vrot.slane %v776, %v949
    %v984 = vunpack.c.l.b16 %v744
    %v985 = vunpack.c.l.b16 %v745
    %v986 = vunpack.c.l.b16 %v746
    %v987 = vunpack.c.l.b16 %v747
    %v988 = vunpack.c.l.b16 %v748
    %v989 = vunpack.c.l.b16 %v749
    %v990 = vunpack.c.l.b16 %v750
    %v991 = vunpack.c.l.b16 %v751
    %v992 = vunpack.c.l.b16 %v752
    %v993 = vunpack.c.l.b16 %v753
    %v994 = vunpack.c.l.b16 %v754
    %v995 = vunpack.c.l.b16 %v755
    %v996 = vunpack.c.l.b16 %v756
    %v997 = vunpack.c.l.b16 %v757
    %v998 = vunpack.c.l.b16 %v758
    %v999 = vunpack.c.l.b16 %v759
    %v1000 = vunpack.c.l.b16 %v760
    %v1001 = vunpack.c.l.b16 %v761
    %v1002 = vunpack.c.l.b16 %v762
    %v1003 = vunpack.c.l.b16 %v763
    %v1004 = vunpack.c.l.b16 %v764
    %v1005 = vunpack.c.l.b16 %v765
    %v1006 = vunpack.c.l.b16 %v766
    %v1007 = vunpack.c.l.b16 %v767
    %v1008 = vunpack.c.l.b16 %v768
    %v1009 = vunpack.c.l.b16 %v769
    %v1010 = vunpack.c.l.b16 %v770
    %v1011 = vunpack.c.l.b16 %v771
    %v1012 = vunpack.c.l.b16 %v772
    %v1013 = vunpack.c.l.b16 %v773
    %v1014 = vunpack.c.l.b16 %v774
    %v1015 = vunpack.c.l.b16 %v775
    %v1016 = vpack.c.b16 %v985, %v984
    %v1017 = vpack.c.b16 %v987, %v986
    %v1018 = vpack.c.b16 %v989, %v988
    %v1019 = vpack.c.b16 %v991, %v990
    %v1020 = vpack.c.b16 %v993, %v992
    %v1021 = vpack.c.b16 %v995, %v994
    %v1022 = vpack.c.b16 %v997, %v996
    %v1023 = vpack.c.b16 %v999, %v998
    %v1024 = vpack.c.b16 %v1001, %v1000
    %v1025 = vpack.c.b16 %v1003, %v1002
    %v1026 = vpack.c.b16 %v1005, %v1004
    %v1027 = vpack.c.b16 %v1007, %v1006
    %v1028 = vpack.c.b16 %v1009, %v1008
    %v1029 = vpack.c.b16 %v1011, %v1010
    %v1030 = vpack.c.b16 %v1013, %v1012
    %v1031 = vpack.c.b16 %v1015, %v1014
    %1048 = vmatprep.subr.bf16.mxu0 0
    %1049 = vmatpush1.bf16.msra.mxu0 %v1016
    %1050 = vmatprep.subr.bf16.mxu0 0
    %1051 = vmatpush1.bf16.msra.mxu0 %v1017
    %1052 = vmatprep.subr.bf16.mxu0 0
    %1053 = vmatpush1.bf16.msra.mxu0 %v1018
    %1054 = vmatprep.subr.bf16.mxu0 0
    %1055 = vmatpush1.bf16.msra.mxu0 %v1019
    %1056 = vmatprep.subr.bf16.mxu0 0
    %1057 = vmatpush1.bf16.msra.mxu0 %v1020
    %1058 = vmatprep.subr.bf16.mxu0 0
    %1059 = vmatpush1.bf16.msra.mxu0 %v1021
    %1060 = vmatprep.subr.bf16.mxu0 0
    %1061 = vmatpush1.bf16.msra.mxu0 %v1022
    %1062 = vmatprep.subr.bf16.mxu0 0
    %1063 = vmatpush1.bf16.msra.mxu0 %v1023
    %1064 = vmatprep.subr.bf16.mxu0 0
    %1065 = vmatpush1.bf16.msra.mxu0 %v1024
    %1066 = vmatprep.subr.bf16.mxu0 0
    %1067 = vmatpush1.bf16.msra.mxu0 %v1025
    %1068 = vmatprep.subr.bf16.mxu0 0
    %1069 = vmatpush1.bf16.msra.mxu0 %v1026
    %1070 = vmatprep.subr.bf16.mxu0 0
    %1071 = vmatpush1.bf16.msra.mxu0 %v1027
    %1072 = vmatprep.subr.bf16.mxu0 0
    %1073 = vmatpush1.bf16.msra.mxu0 %v1028
    %1074 = vmatprep.subr.bf16.mxu0 0
    %1075 = vmatpush1.bf16.msra.mxu0 %v1029
    %1076 = vmatprep.subr.bf16.mxu0 0
    %1077 = vmatpush1.bf16.msra.mxu0 %v1030
    %1078 = vmatprep.subr.bf16.mxu0 0
    %1079 = vmatpush1.bf16.msra.mxu0 %v1031
    %1080 = vmatprep.mubr.bf16.mxu0 %v943
    %1081 = vmatmul.mubr.bf16.gmra.mrb[0].mxu0 %v942
    %v1082 = vpop.f32.mrb[0].mxu0
    %v1083 = vadd.f32 %v950, %v1082
    %v1084 = vpop.f32.mrb[0].mxu0
    %v1085 = vpop.f32.mrb[0].mxu0
    %v1086 = vadd.f32 %v950, %v1085
    %v1087 = vpop.f32.mrb[0].mxu0
    %1088 = vmatprep.mubr.bf16.mxu0 %v945
    %1089 = vmatmul.mubr.bf16.gmra.mrb[0].mxu0 %v944
    %v1090 = vpop.f32.mrb[0].mxu0
    %v1091 = vadd.f32 %v950, %v1090
    %v1092 = vpop.f32.mrb[0].mxu0
    %v1093 = vpop.f32.mrb[0].mxu0
    %v1094 = vadd.f32 %v950, %v1093
    %v1095 = vpop.f32.mrb[0].mxu0
    %1096 = vdwg.mxu0
    %1097 = vst [vmem:[#allocation8] sm:$0xff] %v1083
    %1098 = vst [vmem:[#allocation8 + $0x8] sm:$0xff] %v1086
    %1099 = vst [vmem:[#allocation8 + $0x10] sm:$0xff] %v1091
    %1100 = vst [vmem:[#allocation8 + $0x18] sm:$0xff] %v1094
    // Predicated region
    $region82: #{torsion_mlp_forward.1} parent=1 // pred_check
      _
    $region83: #{torsion_mlp_forward.1} parent=1 // pred_check_branch
      %1102 = sbr.rel (0) target = $region85
    $region84: #{torsion_mlp_forward.1} parent=1 // pred_region
      %s1104 = ssub.s32 512, 512
      %1105 = vsyncadd [#allocation4], %s1104
      %s1106 = sshll.u32 [#allocation8], 4
      %s1107 = int_to_ptr.vmem [resolvable:$true] %s1106
      %1112 = dma.vmem_to_hbm [thread:$0]  %s1107, 512, %s17, [#allocation4], 128, 128, 8
    $region85: #{torsion_mlp_forward.1} parent=1 // pred_fallthru
      _
    // Predicated region
    $region86: #{torsion_mlp_forward.1} parent=1 // pred_check
      _
    $region87: #{torsion_mlp_forward.1} parent=1 // pred_check_branch
      %1114 = sbr.rel (0) target = $region89
    $region88: #{torsion_mlp_forward.1} parent=1 // pred_region
      %1115 = dma.done [#allocation4], 512
    $region89: #{torsion_mlp_forward.1} parent=1 // pred_fallthru
      _
    %1116 = vsyncpa [#allocation3], 1
    %1117 = vsyncpa [#allocation6], 1
    %1118 = vsyncpa [#allocation4], 1

</llo_original>
